<compile_context>
chip_gen: v7x
topology: tpu7x:2x2x1
jax: 0.10.0
libtpu: 0.0.40
codegen_flags: <defaults>
</compile_context>

<pallas_src>
import jax
import jax.numpy as jnp
from jax.experimental import pallas as pl
from jax.experimental.pallas import tpu as pltpu


def _round_up(n, m=128):
    return ((n + m - 1) // m) * m


def _banded_weight(w_oihw, w_in_size, rows_pad, cols_pad):
    """Fold kw taps + channel mixing of a KHxKW conv into per-kh banded matrices.

    Returns bw of shape (KH, rows_pad, cols_pad) with
        bw[kh, wi*Cin + ci, wo*Cout + co] = w[co, ci, kh, wi - wo]
    for 0 <= wi - wo < KW (zero elsewhere), so that a row-flat (.., W_in*Cin)
    activation row times bw[kh] yields the (.., W_out*Cout) contribution of
    kernel row kh of a VALID cross-correlation (PyTorch Conv2d semantics).
    Pure wrapper-side weight packing (trace-time, tiny).
    """
    Cout, Cin, KH, KW = w_oihw.shape
    w_out_size = w_in_size - KW + 1
    w_hwio = jnp.transpose(w_oihw, (2, 3, 1, 0))            # (KH, KW, Cin, Cout)
    wi = jnp.arange(w_in_size)[:, None]
    wo = jnp.arange(w_out_size)[None, :]
    kw = wi - wo                                            # (W_in, W_out)
    valid = (kw >= 0) & (kw < KW)
    t = w_hwio[:, jnp.clip(kw, 0, KW - 1)]                  # (KH, W_in, W_out, Cin, Cout)
    t = t * valid[None, :, :, None, None].astype(w_hwio.dtype)
    bw = jnp.transpose(t, (0, 1, 3, 2, 4)).reshape(
        KH, w_in_size * Cin, w_out_size * Cout)
    return jnp.pad(bw, ((0, 0),
                        (0, rows_pad - w_in_size * Cin),
                        (0, cols_pad - w_out_size * Cout)))


def _decoder_part_kernel(x_ref, bw1_ref, b1_ref, bw2_ref, b2_ref, o_ref):
    # x_ref  : (R, Lin)      R = NB*H rows (batch folded into M), Lin = W*Cin
    # bw1_ref: (3, Lin, P1)  banded conv1 weights (kw taps + channel mix folded)
    # b1_ref : (1, P1)       bias broadcast over the W1*Cout lane layout
    # bw2_ref: (3, P1, P2)
    # b2_ref : (1, P2)
    # o_ref  : (R, P2)       lane-dense (P2 % 128 == 0); rows [0, R-4) meaningful
    R = x_ref.shape[0]
    R1 = R - 2
    R2 = R - 4

    # ---- conv1 (3 kh-taps, each one wide MXU matmul) + bias + ReLU ----
    acc1 = jnp.dot(x_ref[0:R1, :], bw1_ref[0],
                   preferred_element_type=jnp.float32)
    acc1 += jnp.dot(x_ref[1:R1 + 1, :], bw1_ref[1],
                    preferred_element_type=jnp.float32)
    acc1 += jnp.dot(x_ref[2:R1 + 2, :], bw1_ref[2],
                    preferred_element_type=jnp.float32)
    h1 = jnp.maximum(acc1 + b1_ref[...], 0.0)       # (R1, P1), stays lane-flat

    # ---- conv2 + bias + ReLU (h1 consumed in the same flat layout) ----
    acc2 = jnp.dot(h1[0:R2, :], bw2_ref[0], preferred_element_type=jnp.float32)
    acc2 += jnp.dot(h1[1:R2 + 1, :], bw2_ref[1],
                    preferred_element_type=jnp.float32)
    acc2 += jnp.dot(h1[2:R2 + 2, :], bw2_ref[2],
                    preferred_element_type=jnp.float32)
    out = jnp.maximum(acc2 + b2_ref[...], 0.0)

    # Lane-dense (128-wide) store; trailing 4 rows of the block are don't-care.
    o_ref[0:R2, :] = out.astype(o_ref.dtype)


def decoder_part_forward(x_nchw, w1_oihw, b1, w2_oihw, b2):
    """x_nchw: (N, Cin, H, W) float32.  Returns (N, Cout, H-4, W-4)."""
    N, Cin, H, W = x_nchw.shape
    Cout = w1_oihw.shape[0]
    W1 = W - 2
    H2, W2 = H - 4, W - 4
    Lin = W * Cin
    P1 = _round_up(W1 * Cout, 128)
    P2 = _round_up(W2 * Cout, 128)

    # Fold as many batch elements as possible into one grid step (M dimension),
    # but keep a parallel grid axis when N*H is large (feeds 2 TCs on v7x).
    NB = max(1, min(N, max(1, 256 // H)))
    while N % NB:
        NB -= 1
    if N // NB > 1 and (NB * H) % 8 != 0:
        NB = N                      # keep block shapes (8,128)-legal
    T = N // NB
    R = NB * H

    # ---- wrapper-side layout plumbing: NCHW -> row-flat (N*H, W*Cin) ----
    x_flat = jnp.transpose(x_nchw, (0, 2, 3, 1)).reshape(N * H, Lin)

    # Banded weights / lane-broadcast biases (trace-time packing, tiny).
    bw1 = _banded_weight(w1_oihw, W, Lin, P1)                 # (3, Lin, P1)
    bw2 = _banded_weight(w2_oihw, W1, P1, P2)                 # (3, P1,  P2)
    b1_row = jnp.pad(jnp.tile(b1, W1), (0, P1 - W1 * Cout)).reshape(1, P1)
    b2_row = jnp.pad(jnp.tile(b2, W2), (0, P2 - W2 * Cout)).reshape(1, P2)

    out_flat = pl.pallas_call(
        _decoder_part_kernel,
        out_shape=jax.ShapeDtypeStruct((N * H, P2), x_nchw.dtype),
        grid_spec=pltpu.PrefetchScalarGridSpec(
            num_scalar_prefetch=0,
            grid=(T,),
            in_specs=[
                pl.BlockSpec((R, Lin), lambda t: (t, 0)),
                pl.BlockSpec((3, Lin, P1), lambda t: (0, 0, 0)),
                pl.BlockSpec((1, P1), lambda t: (0, 0)),
                pl.BlockSpec((3, P1, P2), lambda t: (0, 0, 0)),
                pl.BlockSpec((1, P2), lambda t: (0, 0)),
            ],
            out_specs=pl.BlockSpec((R, P2), lambda t: (t, 0)),
        ),
        compiler_params=pltpu.CompilerParams(
            dimension_semantics=("parallel",),
            vmem_limit_bytes=32 * 1024 * 1024),
    )(x_flat, bw1, b1_row, bw2, b2_row)

    # ---- wrapper-side layout plumbing: flat padded slab -> NCHW valid window ----
    out = out_flat.reshape(N, H, P2)[:, :H2, :W2 * Cout]
    out = out.reshape(N, H2, W2, Cout)
    return jnp.transpose(out, (0, 3, 1, 2))


def _reference_forward(x_nchw, w1_oihw, b1, w2_oihw, b2):
    dn = ("NCHW", "OIHW", "NCHW")
    y = jax.lax.conv_general_dilated(x_nchw, w1_oihw, (1, 1), "VALID",
                                     dimension_numbers=dn)
    y = jax.nn.relu(y + b1.reshape(1, -1, 1, 1))
    y = jax.lax.conv_general_dilated(y, w2_oihw, (1, 1), "VALID",
                                     dimension_numbers=dn)
    y = jax.nn.relu(y + b2.reshape(1, -1, 1, 1))
    return y


if __name__ == "__main__":
    # Small shapes consistent with DecoderPart(input_channels=4, output_channels=8)
    N, Cin, Cout, H, W = 2, 4, 8, 16, 16

    key = jax.random.PRNGKey(0)
    kx, kw1, kb1, kw2, kb2 = jax.random.split(key, 5)

    x = jax.random.normal(kx, (N, Cin, H, W), dtype=jnp.float32)

    # Deterministic parameter init (PyTorch-like uniform fan-in scaling).
    fan1 = Cin * 3 * 3
    w1 = jax.random.uniform(kw1, (Cout, Cin, 3, 3), jnp.float32,
                            -1.0 / fan1 ** 0.5, 1.0 / fan1 ** 0.5)
    b1 = jax.random.uniform(kb1, (Cout,), jnp.float32,
                            -1.0 / fan1 ** 0.5, 1.0 / fan1 ** 0.5)
    fan2 = Cout * 3 * 3
    w2 = jax.random.uniform(kw2, (Cout, Cout, 3, 3), jnp.float32,
                            -1.0 / fan2 ** 0.5, 1.0 / fan2 ** 0.5)
    b2 = jax.random.uniform(kb2, (Cout,), jnp.float32,
                            -1.0 / fan2 ** 0.5, 1.0 / fan2 ** 0.5)

    out = jax.block_until_ready(decoder_part_forward(x, w1, b1, w2, b2))
    ref = jax.block_until_ready(_reference_forward(x, w1, b1, w2, b2))

    assert out.shape == (N, Cout, H - 4, W - 4), out.shape
    assert jnp.allclose(out, ref, atol=1e-5, rtol=1e-5), float(
        jnp.max(jnp.abs(out - ref)))
    print("KERNEL_OK")
</pallas_src>

<mosaic_0001>
module attributes {stable_mosaic.version = 11 : i64} {
  func.func @_decoder_part_kernel(%arg0: i32, %arg1: memref<32x64xf32, #tpu.memory_space<vmem>>, %arg2: memref<3x64x128xf32, #tpu.memory_space<vmem>>, %arg3: memref<1x128xf32, #tpu.memory_space<vmem>>, %arg4: memref<3x128x128xf32, #tpu.memory_space<vmem>>, %arg5: memref<1x128xf32, #tpu.memory_space<vmem>>, %arg6: memref<32x128xf32, #tpu.memory_space<vmem>>) attributes {dimension_semantics = [#tpu.dimension_semantics<parallel>], iteration_bounds = array<i64: 1>, scalar_prefetch = 0 : i64, scratch_operands = 0 : i64, tpu.core_type = #tpu.core_type<tc>, window_params = [{transform_indices = @transform_0, window_bounds = array<i64: 32, 64>}, {pipeline_mode = #tpu.pipeline_mode<synchronous>, transform_indices = @transform_1, window_bounds = array<i64: 3, 64, 128>}, {pipeline_mode = #tpu.pipeline_mode<synchronous>, transform_indices = @transform_2, window_bounds = array<i64: 1, 128>}, {pipeline_mode = #tpu.pipeline_mode<synchronous>, transform_indices = @transform_3, window_bounds = array<i64: 3, 128, 128>}, {pipeline_mode = #tpu.pipeline_mode<synchronous>, transform_indices = @transform_4, window_bounds = array<i64: 1, 128>}, {transform_indices = @transform_5, window_bounds = array<i64: 32, 128>}]} {
    %c0 = arith.constant 0 : index
    %c0_0 = arith.constant 0 : index
    %0 = vector.load %arg1[%c0, %c0_0] : memref<32x64xf32, #tpu.memory_space<vmem>>, vector<30x64xf32>
    %c0_1 = arith.constant 0 : index
    %c0_2 = arith.constant 0 : index
    %c0_3 = arith.constant 0 : index
    %1 = vector.load %arg2[%c0_1, %c0_2, %c0_3] : memref<3x64x128xf32, #tpu.memory_space<vmem>>, vector<1x64x128xf32>
    %2 = vector.shape_cast %1 : vector<1x64x128xf32> to vector<64x128xf32>
    %cst = arith.constant dense<0.000000e+00> : vector<30x128xf32>
    %3 = tpu.matmul %0, %2, %cst {dimension_numbers = #tpu.dot_dimension_numbers<[1], [0], [0], [1], [0, 0, 1, 1], [], []>} : vector<30x64xf32>, vector<64x128xf32>, vector<30x128xf32> -> vector<30x128xf32>
    %c1 = arith.constant 1 : index
    %c0_4 = arith.constant 0 : index
    %4 = vector.load %arg1[%c1, %c0_4] : memref<32x64xf32, #tpu.memory_space<vmem>>, vector<30x64xf32>
    %c1_5 = arith.constant 1 : index
    %c0_6 = arith.constant 0 : index
    %c0_7 = arith.constant 0 : index
    %5 = vector.load %arg2[%c1_5, %c0_6, %c0_7] : memref<3x64x128xf32, #tpu.memory_space<vmem>>, vector<1x64x128xf32>
    %6 = vector.shape_cast %5 : vector<1x64x128xf32> to vector<64x128xf32>
    %cst_8 = arith.constant dense<0.000000e+00> : vector<30x128xf32>
    %7 = tpu.matmul %4, %6, %cst_8 {dimension_numbers = #tpu.dot_dimension_numbers<[1], [0], [0], [1], [0, 0, 1, 1], [], []>} : vector<30x64xf32>, vector<64x128xf32>, vector<30x128xf32> -> vector<30x128xf32>
    %8 = arith.addf %3, %7 : vector<30x128xf32>
    %c2 = arith.constant 2 : index
    %c0_9 = arith.constant 0 : index
    %9 = vector.load %arg1[%c2, %c0_9] : memref<32x64xf32, #tpu.memory_space<vmem>>, vector<30x64xf32>
    %c2_10 = arith.constant 2 : index
    %c0_11 = arith.constant 0 : index
    %c0_12 = arith.constant 0 : index
    %10 = vector.load %arg2[%c2_10, %c0_11, %c0_12] : memref<3x64x128xf32, #tpu.memory_space<vmem>>, vector<1x64x128xf32>
    %11 = vector.shape_cast %10 : vector<1x64x128xf32> to vector<64x128xf32>
    %cst_13 = arith.constant dense<0.000000e+00> : vector<30x128xf32>
    %12 = tpu.matmul %9, %11, %cst_13 {dimension_numbers = #tpu.dot_dimension_numbers<[1], [0], [0], [1], [0, 0, 1, 1], [], []>} : vector<30x64xf32>, vector<64x128xf32>, vector<30x128xf32> -> vector<30x128xf32>
    %13 = arith.addf %8, %12 : vector<30x128xf32>
    %c0_14 = arith.constant 0 : index
    %c0_15 = arith.constant 0 : index
    %14 = vector.load %arg3[%c0_14, %c0_15] : memref<1x128xf32, #tpu.memory_space<vmem>>, vector<1x128xf32>
    %15 = vector.broadcast %14 : vector<1x128xf32> to vector<30x128xf32>
    %16 = arith.addf %13, %15 : vector<30x128xf32>
    %cst_16 = arith.constant 0.000000e+00 : f32
    %17 = vector.broadcast %cst_16 : f32 to vector<30x128xf32>
    %18 = arith.maximumf %16, %17 : vector<30x128xf32>
    %19 = vector.extract_strided_slice %18 {offsets = [0, 0], sizes = [28, 128], strides = [1, 1]} : vector<30x128xf32> to vector<28x128xf32>
    %c0_17 = arith.constant 0 : index
    %c0_18 = arith.constant 0 : index
    %c0_19 = arith.constant 0 : index
    %20 = vector.load %arg4[%c0_17, %c0_18, %c0_19] : memref<3x128x128xf32, #tpu.memory_space<vmem>>, vector<1x128x128xf32>
    %21 = vector.shape_cast %20 : vector<1x128x128xf32> to vector<128x128xf32>
    %cst_20 = arith.constant dense<0.000000e+00> : vector<28x128xf32>
    %22 = tpu.matmul %19, %21, %cst_20 {dimension_numbers = #tpu.dot_dimension_numbers<[1], [0], [0], [1], [0, 0, 1, 1], [], []>} : vector<28x128xf32>, vector<128x128xf32>, vector<28x128xf32> -> vector<28x128xf32>
    %23 = vector.extract_strided_slice %18 {offsets = [1, 0], sizes = [28, 128], strides = [1, 1]} : vector<30x128xf32> to vector<28x128xf32>
    %c1_21 = arith.constant 1 : index
    %c0_22 = arith.constant 0 : index
    %c0_23 = arith.constant 0 : index
    %24 = vector.load %arg4[%c1_21, %c0_22, %c0_23] : memref<3x128x128xf32, #tpu.memory_space<vmem>>, vector<1x128x128xf32>
    %25 = vector.shape_cast %24 : vector<1x128x128xf32> to vector<128x128xf32>
    %cst_24 = arith.constant dense<0.000000e+00> : vector<28x128xf32>
    %26 = tpu.matmul %23, %25, %cst_24 {dimension_numbers = #tpu.dot_dimension_numbers<[1], [0], [0], [1], [0, 0, 1, 1], [], []>} : vector<28x128xf32>, vector<128x128xf32>, vector<28x128xf32> -> vector<28x128xf32>
    %27 = arith.addf %22, %26 : vector<28x128xf32>
    %28 = vector.extract_strided_slice %18 {offsets = [2, 0], sizes = [28, 128], strides = [1, 1]} : vector<30x128xf32> to vector<28x128xf32>
    %c2_25 = arith.constant 2 : index
    %c0_26 = arith.constant 0 : index
    %c0_27 = arith.constant 0 : index
    %29 = vector.load %arg4[%c2_25, %c0_26, %c0_27] : memref<3x128x128xf32, #tpu.memory_space<vmem>>, vector<1x128x128xf32>
    %30 = vector.shape_cast %29 : vector<1x128x128xf32> to vector<128x128xf32>
    %cst_28 = arith.constant dense<0.000000e+00> : vector<28x128xf32>
    %31 = tpu.matmul %28, %30, %cst_28 {dimension_numbers = #tpu.dot_dimension_numbers<[1], [0], [0], [1], [0, 0, 1, 1], [], []>} : vector<28x128xf32>, vector<128x128xf32>, vector<28x128xf32> -> vector<28x128xf32>
    %32 = arith.addf %27, %31 : vector<28x128xf32>
    %c0_29 = arith.constant 0 : index
    %c0_30 = arith.constant 0 : index
    %33 = vector.load %arg5[%c0_29, %c0_30] : memref<1x128xf32, #tpu.memory_space<vmem>>, vector<1x128xf32>
    %34 = vector.broadcast %33 : vector<1x128xf32> to vector<28x128xf32>
    %35 = arith.addf %32, %34 : vector<28x128xf32>
    %cst_31 = arith.constant 0.000000e+00 : f32
    %36 = vector.broadcast %cst_31 : f32 to vector<28x128xf32>
    %37 = arith.maximumf %35, %36 : vector<28x128xf32>
    %c0_32 = arith.constant 0 : index
    %c0_33 = arith.constant 0 : index
    %38 = vector.load %arg6[%c0_32, %c0_33] : memref<32x128xf32, #tpu.memory_space<vmem>>, vector<28x128xf32>
    tpu.vector_store %arg6[%c0_32, %c0_33], %37 {strides = array<i32>} : memref<32x128xf32, #tpu.memory_space<vmem>>, vector<28x128xf32>,
    return
  }
  func.func @transform_0(%arg0: i32) -> (i32, i32) {
    %c0_i32 = arith.constant 0 : i32
    %c0_i32_0 = arith.constant 0 : i32
    return %arg0, %c0_i32 : i32, i32
  }
  func.func @transform_1(%arg0: i32) -> (i32, i32, i32) {
    %c0_i32 = arith.constant 0 : i32
    %c0_i32_0 = arith.constant 0 : i32
    %c0_i32_1 = arith.constant 0 : i32
    %c0_i32_2 = arith.constant 0 : i32
    return %c0_i32, %c0_i32_0, %c0_i32_1 : i32, i32, i32
  }
  func.func @transform_2(%arg0: i32) -> (i32, i32) {
    %c0_i32 = arith.constant 0 : i32
    %c0_i32_0 = arith.constant 0 : i32
    %c0_i32_1 = arith.constant 0 : i32
    return %c0_i32, %c0_i32_0 : i32, i32
  }
  func.func @transform_3(%arg0: i32) -> (i32, i32, i32) {
    %c0_i32 = arith.constant 0 : i32
    %c0_i32_0 = arith.constant 0 : i32
    %c0_i32_1 = arith.constant 0 : i32
    %c0_i32_2 = arith.constant 0 : i32
    return %c0_i32, %c0_i32_0, %c0_i32_1 : i32, i32, i32
  }
  func.func @transform_4(%arg0: i32) -> (i32, i32) {
    %c0_i32 = arith.constant 0 : i32
    %c0_i32_0 = arith.constant 0 : i32
    %c0_i32_1 = arith.constant 0 : i32
    return %c0_i32, %c0_i32_0 : i32, i32
  }
  func.func @transform_5(%arg0: i32) -> (i32, i32) {
    %c0_i32 = arith.constant 0 : i32
    %c0_i32_0 = arith.constant 0 : i32
    return %arg0, %c0_i32 : i32, i32
  }
}

</mosaic_0001>

<llo_original>
// kernel: tpu_custom_call.1
$region0: #{tpu_custom_call.1}
  #allocation0 [shape = 'u32[]', space=smem, size = 0x4, offset = 0x4, fixed_abs, tag = 'smem constant byte address 0x4 - core index']
  #allocation1 [shape = 'u32[144,128]{1,0:T(1,128)}', space=vmem, size = 0x12000, scoped, tag = 'internal scratch']
  %s0 = inlined_call_operand.hbm [shape: f32[32,64], index: 0, kind: input, shape index: {}]
  %s1 = inlined_call_operand.hbm [shape: f32[3,64,128], index: 1, kind: input, shape index: {}]
  %s2 = inlined_call_operand.vmem [shape: f32[1,128], index: 2, kind: input, shape index: {}]
  %s3 = inlined_call_operand.hbm [shape: f32[3,128,128], index: 3, kind: input, shape index: {}]
  %s4 = inlined_call_operand.vmem [shape: f32[1,128], index: 4, kind: input, shape index: {}]
  %s5 = inlined_call_operand.hbm [shape: f32[32,128], index: 5, kind: output, shape index: {}]
  %s6 = sld [smem:[#allocation0]]
  $region42: #{tpu_custom_call.1} parent=0
    _
  %s8 = ssub.s32 1, %s6
  %s9 = scalar_select 0, %s8, %s6
  $region1: #{tpu_custom_call.1} parent=0
    #allocation2 [shape = 'u8[16384]{0}', space=vmem, size = 0x4000, scoped, tag = 'input window, operand 0, single buffered']
    #allocation3 [shape = 's32[1]{0}', space=sflag, size = 0x4, scoped, tag = 'scoped memory for tpu_custom_call.1']
    #allocation4 [shape = 's32[1]{0}', space=sflag, size = 0x4, scoped, tag = 'scoped memory for tpu_custom_call.1']
    #allocation5 [shape = 'u8[98304]{0}', space=vmem, size = 0x18000, scoped, tag = 'input window, operand 1, single buffered']
    #allocation6 [shape = 's32[1]{0}', space=sflag, size = 0x4, scoped, tag = 'scoped memory for tpu_custom_call.1']
    #allocation7 [shape = 'u8[196608]{0}', space=vmem, size = 0x30000, scoped, tag = 'input window, operand 3, single buffered']
    #allocation8 [shape = 'u8[16384]{0}', space=vmem, size = 0x4000, scoped, tag = 'output window, operand 0, single buffered']
    %10 = vsyncpa [#allocation3], 0
    %11 = vsyncpa [#allocation6], 0
    %12 = vsyncpa [#allocation4], 0
    // Predicated region
    $region2: #{tpu_custom_call.1} parent=1 // pred_check
      _
    $region3: #{tpu_custom_call.1} parent=1 // pred_check_branch
      %14 = sbr.rel (0) target = $region5
    $region4: #{tpu_custom_call.1} parent=1 // pred_region
      %s16 = ssub.s32 512, 512
      %17 = vsyncadd [#allocation3], %s16
      %s18 = sshll.u32 [#allocation2], 4
      %s19 = int_to_ptr.vmem [resolvable:$true] %s18
      %24 = dma.hbm_to_vmem [thread:$0]  %s0, 512, %s19, [#allocation3], 128, 128, 8
    $region5: #{tpu_custom_call.1} parent=1 // pred_fallthru
      _
    // Predicated region
    $region6: #{tpu_custom_call.1} parent=1 // pred_check
      _
    $region7: #{tpu_custom_call.1} parent=1 // pred_check_branch
      %26 = sbr.rel (0) target = $region9
    $region8: #{tpu_custom_call.1} parent=1 // pred_region
      %s28 = ssub.s32 3072, 3072
      %29 = vsyncadd [#allocation6], %s28
      %s30 = sshll.u32 [#allocation5], 4
      %s31 = int_to_ptr.vmem [resolvable:$true] %s30
      %36 = dma.hbm_to_vmem [thread:$0]  %s1, 3072, %s31, [#allocation6], 128, 128, 8
    $region9: #{tpu_custom_call.1} parent=1 // pred_fallthru
      _
    // Predicated region
    $region10: #{tpu_custom_call.1} parent=1 // pred_check
      _
    $region11: #{tpu_custom_call.1} parent=1 // pred_check_branch
      %38 = sbr.rel (0) target = $region13
    $region12: #{tpu_custom_call.1} parent=1 // pred_region
      _
    $region13: #{tpu_custom_call.1} parent=1 // pred_fallthru
      _
    // Predicated region
    $region14: #{tpu_custom_call.1} parent=1 // pred_check
      _
    $region15: #{tpu_custom_call.1} parent=1 // pred_check_branch
      %40 = sbr.rel (0) target = $region17
    $region16: #{tpu_custom_call.1} parent=1 // pred_region
      %s42 = ssub.s32 6144, 6144
      %43 = vsyncadd [#allocation6], %s42
      %s44 = sshll.u32 [#allocation7], 4
      %s45 = int_to_ptr.vmem [resolvable:$true] %s44
      %50 = dma.hbm_to_vmem [thread:$0]  %s3, 6144, %s45, [#allocation6], 128, 128, 8
    $region17: #{tpu_custom_call.1} parent=1 // pred_fallthru
      _
    // Predicated region
    $region18: #{tpu_custom_call.1} parent=1 // pred_check
      _
    $region19: #{tpu_custom_call.1} parent=1 // pred_check_branch
      %52 = sbr.rel (0) target = $region21
    $region20: #{tpu_custom_call.1} parent=1 // pred_region
      _
    $region21: #{tpu_custom_call.1} parent=1 // pred_fallthru
      _
    // Predicated region
    $region22: #{tpu_custom_call.1} parent=1 // pred_check
      _
    $region23: #{tpu_custom_call.1} parent=1 // pred_check_branch
      %54 = sbr.rel (0) target = $region25
    $region24: #{tpu_custom_call.1} parent=1 // pred_region
      %55 = dma.done [#allocation3], 512
    $region25: #{tpu_custom_call.1} parent=1 // pred_fallthru
      _
    // Predicated region
    $region26: #{tpu_custom_call.1} parent=1 // pred_check
      _
    $region27: #{tpu_custom_call.1} parent=1 // pred_check_branch
      %57 = sbr.rel (0) target = $region29
    $region28: #{tpu_custom_call.1} parent=1 // pred_region
      %58 = dma.done [#allocation6], 3072
    $region29: #{tpu_custom_call.1} parent=1 // pred_fallthru
      _
    // Predicated region
    $region30: #{tpu_custom_call.1} parent=1 // pred_check
      _
    $region31: #{tpu_custom_call.1} parent=1 // pred_check_branch
      %60 = sbr.rel (0) target = $region33
    $region32: #{tpu_custom_call.1} parent=1 // pred_region
      %61 = dma.done [#allocation6], 6144
    $region33: #{tpu_custom_call.1} parent=1 // pred_fallthru
      _
    %v62 = vld [vmem:[#allocation2] sm:$0xff]
    %v63 = vld [vmem:[#allocation2 + $0x8] sm:$0xff]
    %v64 = vld [vmem:[#allocation2 + $0x10] sm:$0xff]
    %v65 = vld [vmem:[#allocation2 + $0x18] sm:$0x3f]
    %v66 = vld [vmem:[#allocation5] sm:$0xff]
    %v67 = vld [vmem:[#allocation5 + $0x8] sm:$0xff]
    %v68 = vld [vmem:[#allocation5 + $0x10] sm:$0xff]
    %v69 = vld [vmem:[#allocation5 + $0x18] sm:$0xff]
    %v70 = vld [vmem:[#allocation5 + $0x20] sm:$0xff]
    %v71 = vld [vmem:[#allocation5 + $0x28] sm:$0xff]
    %v72 = vld [vmem:[#allocation5 + $0x30] sm:$0xff]
    %v73 = vld [vmem:[#allocation5 + $0x38] sm:$0xff]
    %v74 = vld [vmem:[#allocation2 + $0x1] sm:$0xff]
    %v75 = vld [vmem:[#allocation2 + $0x9] sm:$0xff]
    %v76 = vld [vmem:[#allocation2 + $0x11] sm:$0xff]
    %v77 = vld [vmem:[#allocation2 + $0x19] sm:$0x3f]
    %s78 = scalar_lea.vmem [#allocation5], 64
    %v79 = vld [vmem:[%s78] sm:$0xff]
    %v80 = vld [vmem:[%s78 + $0x8] sm:$0xff]
    %v81 = vld [vmem:[%s78 + $0x10] sm:$0xff]
    %v82 = vld [vmem:[%s78 + $0x18] sm:$0xff]
    %v83 = vld [vmem:[%s78 + $0x20] sm:$0xff]
    %v84 = vld [vmem:[%s78 + $0x28] sm:$0xff]
    %v85 = vld [vmem:[%s78 + $0x30] sm:$0xff]
    %v86 = vld [vmem:[%s78 + $0x38] sm:$0xff]
    %vm87 = vcmask 523264
    %v89 = vsel %vm87, %v74, 0
    %v92 = vsel %vm87, %v75, 0
    %v95 = vsel %vm87, %v76, 0
    %v98 = vsel %vm87, %v77, 0
    %100 = vmatprep.subr.mxu0 0.0
    %101 = vmatpush1.msra.mxu0 %v79
    %102 = vmatprep.subr.mxu0 0.0
    %103 = vmatpush1.msra.mxu0 %v80
    %104 = vmatprep.subr.mxu0 0.0
    %105 = vmatpush1.msra.mxu0 %v81
    %106 = vmatprep.subr.mxu0 0.0
    %107 = vmatpush1.msra.mxu0 %v82
    %108 = vmatprep.subr.mxu0 0.0
    %109 = vmatpush1.msra.mxu0 %v83
    %110 = vmatprep.subr.mxu0 0.0
    %111 = vmatpush1.msra.mxu0 %v84
    %112 = vmatprep.subr.mxu0 0.0
    %113 = vmatpush1.msra.mxu0 %v85
    %114 = vmatprep.subr.mxu0 0.0
    %115 = vmatpush1.msra.mxu0 %v86
    %116 = vmatprep.subr.mxu0 0.0
    %117 = vmatpush1.msra.mxu0 0.0
    %118 = vmatprep.subr.mxu0 0.0
    %119 = vmatpush1.msra.mxu0 0.0
    %120 = vmatprep.subr.mxu0 0.0
    %121 = vmatpush1.msra.mxu0 0.0
    %122 = vmatprep.subr.mxu0 0.0
    %123 = vmatpush1.msra.mxu0 0.0
    %124 = vmatprep.subr.mxu0 0.0
    %125 = vmatpush1.msra.mxu0 0.0
    %126 = vmatprep.subr.mxu0 0.0
    %127 = vmatpush1.msra.mxu0 0.0
    %128 = vmatprep.subr.mxu0 0.0
    %129 = vmatpush1.msra.mxu0 0.0
    %130 = vmatprep.subr.mxu0 0.0
    %131 = vmatpush1.msra.mxu0 0.0
    %132 = vmatprep.subr.mxu0 0.0
    %133 = vmatpush1.msra.mxu0 0.0
    %134 = vmatprep.subr.mxu0 0.0
    %135 = vmatpush1.msra.mxu0 0.0
    %136 = vmatprep.subr.mxu0 0.0
    %137 = vmatpush1.msra.mxu0 0.0
    %138 = vmatprep.subr.mxu0 0.0
    %139 = vmatpush1.msra.mxu0 0.0
    %140 = vmatprep.subr.mxu0 0.0
    %141 = vmatpush1.msra.mxu0 0.0
    %142 = vmatprep.subr.mxu0 0.0
    %143 = vmatpush1.msra.mxu0 0.0
    %144 = vmatprep.subr.mxu0 0.0
    %145 = vmatpush1.msra.mxu0 0.0
    %146 = vmatprep.subr.mxu0 0.0
    %147 = vmatpush1.msra.mxu0 0.0
    %148 = vmatprep.subr.mxu0 0.0
    %149 = vmatpush1.msra.mxu0 0.0
    %150 = vmatprep.subr.mxu0 0.0
    %151 = vmatpush1.msra.mxu0 0.0
    %152 = vmatprep.subr.mxu0 0.0
    %153 = vmatpush1.msra.mxu0 0.0
    %154 = vmatprep.subr.mxu0 0.0
    %155 = vmatpush1.msra.mxu0 0.0
    %156 = vmatprep.subr.mxu0 0.0
    %157 = vmatpush1.msra.mxu0 0.0
    %158 = vmatprep.subr.mxu0 0.0
    %159 = vmatpush1.msra.mxu0 0.0
    %160 = vmatprep.subr.mxu0 0.0
    %161 = vmatpush1.msra.mxu0 0.0
    %162 = vmatprep.subr.mxu0 0.0
    %163 = vmatpush1.msra.mxu0 0.0
    %164 = vmatprep.mubr.f32.mxu0 0.0
    %165 = vmatmul.mubr.f32.gmra.mrb[0].mxu0 %v89
    %v166 = vpop.f32.mrb[0].mxu0
    %v167 = vadd.f32 0.0, %v166
    %v168 = vpop.f32.mrb[0].mxu0
    %169 = vmatprep.mubr.f32.mxu0 0.0
    %170 = vmatmul.mubr.f32.gmra.mrb[0].mxu0 %v92
    %v171 = vpop.f32.mrb[0].mxu0
    %v172 = vadd.f32 0.0, %v171
    %v173 = vpop.f32.mrb[0].mxu0
    %174 = vmatprep.mubr.f32.mxu0 0.0
    %175 = vmatmul.mubr.f32.gmra.mrb[0].mxu0 %v95
    %v176 = vpop.f32.mrb[0].mxu0
    %v177 = vadd.f32 0.0, %v176
    %v178 = vpop.f32.mrb[0].mxu0
    %179 = vmatprep.mubr.f32.mxu0 0.0
    %180 = vmatmul.mubr.f32.gmra.mrb[0].mxu0 %v98
    %v181 = vpop.f32.mrb[0].mxu0
    %v182 = vadd.f32 0.0, %v181
    %v183 = vpop.f32.mrb[0].mxu0
    %184 = vdwg.mxu0
    %v186 = vsel %vm87, %v62, 0
    %v189 = vsel %vm87, %v63, 0
    %v192 = vsel %vm87, %v64, 0
    %v195 = vsel %vm87, %v65, 0
    %197 = vmatprep.subr.mxu0 0.0
    %198 = vmatpush1.msra.mxu0 %v66
    %199 = vmatprep.subr.mxu0 0.0
    %200 = vmatpush1.msra.mxu0 %v67
    %201 = vmatprep.subr.mxu0 0.0
    %202 = vmatpush1.msra.mxu0 %v68
    %203 = vmatprep.subr.mxu0 0.0
    %204 = vmatpush1.msra.mxu0 %v69
    %205 = vmatprep.subr.mxu0 0.0
    %206 = vmatpush1.msra.mxu0 %v70
    %207 = vmatprep.subr.mxu0 0.0
    %208 = vmatpush1.msra.mxu0 %v71
    %209 = vmatprep.subr.mxu0 0.0
    %210 = vmatpush1.msra.mxu0 %v72
    %211 = vmatprep.subr.mxu0 0.0
    %212 = vmatpush1.msra.mxu0 %v73
    %213 = vmatprep.subr.mxu0 0.0
    %214 = vmatpush1.msra.mxu0 0.0
    %215 = vmatprep.subr.mxu0 0.0
    %216 = vmatpush1.msra.mxu0 0.0
    %217 = vmatprep.subr.mxu0 0.0
    %218 = vmatpush1.msra.mxu0 0.0
    %219 = vmatprep.subr.mxu0 0.0
    %220 = vmatpush1.msra.mxu0 0.0
    %221 = vmatprep.subr.mxu0 0.0
    %222 = vmatpush1.msra.mxu0 0.0
    %223 = vmatprep.subr.mxu0 0.0
    %224 = vmatpush1.msra.mxu0 0.0
    %225 = vmatprep.subr.mxu0 0.0
    %226 = vmatpush1.msra.mxu0 0.0
    %227 = vmatprep.subr.mxu0 0.0
    %228 = vmatpush1.msra.mxu0 0.0
    %229 = vmatprep.subr.mxu0 0.0
    %230 = vmatpush1.msra.mxu0 0.0
    %231 = vmatprep.subr.mxu0 0.0
    %232 = vmatpush1.msra.mxu0 0.0
    %233 = vmatprep.subr.mxu0 0.0
    %234 = vmatpush1.msra.mxu0 0.0
    %235 = vmatprep.subr.mxu0 0.0
    %236 = vmatpush1.msra.mxu0 0.0
    %237 = vmatprep.subr.mxu0 0.0
    %238 = vmatpush1.msra.mxu0 0.0
    %239 = vmatprep.subr.mxu0 0.0
    %240 = vmatpush1.msra.mxu0 0.0
    %241 = vmatprep.subr.mxu0 0.0
    %242 = vmatpush1.msra.mxu0 0.0
    %243 = vmatprep.subr.mxu0 0.0
    %244 = vmatpush1.msra.mxu0 0.0
    %245 = vmatprep.subr.mxu0 0.0
    %246 = vmatpush1.msra.mxu0 0.0
    %247 = vmatprep.subr.mxu0 0.0
    %248 = vmatpush1.msra.mxu0 0.0
    %249 = vmatprep.subr.mxu0 0.0
    %250 = vmatpush1.msra.mxu0 0.0
    %251 = vmatprep.subr.mxu0 0.0
    %252 = vmatpush1.msra.mxu0 0.0
    %253 = vmatprep.subr.mxu0 0.0
    %254 = vmatpush1.msra.mxu0 0.0
    %255 = vmatprep.subr.mxu0 0.0
    %256 = vmatpush1.msra.mxu0 0.0
    %257 = vmatprep.subr.mxu0 0.0
    %258 = vmatpush1.msra.mxu0 0.0
    %259 = vmatprep.subr.mxu0 0.0
    %260 = vmatpush1.msra.mxu0 0.0
    %261 = vmatprep.mubr.f32.mxu0 0.0
    %262 = vmatmul.mubr.f32.gmra.mrb[0].mxu0 %v186
    %v263 = vpop.f32.mrb[0].mxu0
    %v264 = vadd.f32 %v167, %v263
    %v265 = vpop.f32.mrb[0].mxu0
    %266 = vmatprep.mubr.f32.mxu0 0.0
    %267 = vmatmul.mubr.f32.gmra.mrb[0].mxu0 %v189
    %v268 = vpop.f32.mrb[0].mxu0
    %v269 = vadd.f32 %v172, %v268
    %v270 = vpop.f32.mrb[0].mxu0
    %271 = vmatprep.mubr.f32.mxu0 0.0
    %272 = vmatmul.mubr.f32.gmra.mrb[0].mxu0 %v192
    %v273 = vpop.f32.mrb[0].mxu0
    %v274 = vadd.f32 %v177, %v273
    %v275 = vpop.f32.mrb[0].mxu0
    %276 = vmatprep.mubr.f32.mxu0 0.0
    %277 = vmatmul.mubr.f32.gmra.mrb[0].mxu0 %v195
    %v278 = vpop.f32.mrb[0].mxu0
    %v279 = vadd.f32 %v182, %v278
    %v280 = vpop.f32.mrb[0].mxu0
    %281 = vdwg.mxu0
    %v282 = vld [vmem:[#allocation2 + $0x2] sm:$0xff]
    %v283 = vld [vmem:[#allocation2 + $0xa] sm:$0xff]
    %v284 = vld [vmem:[#allocation2 + $0x12] sm:$0xff]
    %v285 = vld [vmem:[#allocation2 + $0x1a] sm:$0x3f]
    %s286 = scalar_lea.vmem [#allocation5], 128
    %v287 = vld [vmem:[%s286] sm:$0xff]
    %v288 = vld [vmem:[%s286 + $0x8] sm:$0xff]
    %v289 = vld [vmem:[%s286 + $0x10] sm:$0xff]
    %v290 = vld [vmem:[%s286 + $0x18] sm:$0xff]
    %v291 = vld [vmem:[%s286 + $0x20] sm:$0xff]
    %v292 = vld [vmem:[%s286 + $0x28] sm:$0xff]
    %v293 = vld [vmem:[%s286 + $0x30] sm:$0xff]
    %v294 = vld [vmem:[%s286 + $0x38] sm:$0xff]
    %v296 = vsel %vm87, %v282, 0
    %v299 = vsel %vm87, %v283, 0
    %v302 = vsel %vm87, %v284, 0
    %v305 = vsel %vm87, %v285, 0
    %307 = vmatprep.subr.mxu0 0.0
    %308 = vmatpush1.msra.mxu0 %v287
    %309 = vmatprep.subr.mxu0 0.0
    %310 = vmatpush1.msra.mxu0 %v288
    %311 = vmatprep.subr.mxu0 0.0
    %312 = vmatpush1.msra.mxu0 %v289
    %313 = vmatprep.subr.mxu0 0.0
    %314 = vmatpush1.msra.mxu0 %v290
    %315 = vmatprep.subr.mxu0 0.0
    %316 = vmatpush1.msra.mxu0 %v291
    %317 = vmatprep.subr.mxu0 0.0
    %318 = vmatpush1.msra.mxu0 %v292
    %319 = vmatprep.subr.mxu0 0.0
    %320 = vmatpush1.msra.mxu0 %v293
    %321 = vmatprep.subr.mxu0 0.0
    %322 = vmatpush1.msra.mxu0 %v294
    %323 = vmatprep.subr.mxu0 0.0
    %324 = vmatpush1.msra.mxu0 0.0
    %325 = vmatprep.subr.mxu0 0.0
    %326 = vmatpush1.msra.mxu0 0.0
    %327 = vmatprep.subr.mxu0 0.0
    %328 = vmatpush1.msra.mxu0 0.0
    %329 = vmatprep.subr.mxu0 0.0
    %330 = vmatpush1.msra.mxu0 0.0
    %331 = vmatprep.subr.mxu0 0.0
    %332 = vmatpush1.msra.mxu0 0.0
    %333 = vmatprep.subr.mxu0 0.0
    %334 = vmatpush1.msra.mxu0 0.0
    %335 = vmatprep.subr.mxu0 0.0
    %336 = vmatpush1.msra.mxu0 0.0
    %337 = vmatprep.subr.mxu0 0.0
    %338 = vmatpush1.msra.mxu0 0.0
    %339 = vmatprep.subr.mxu0 0.0
    %340 = vmatpush1.msra.mxu0 0.0
    %341 = vmatprep.subr.mxu0 0.0
    %342 = vmatpush1.msra.mxu0 0.0
    %343 = vmatprep.subr.mxu0 0.0
    %344 = vmatpush1.msra.mxu0 0.0
    %345 = vmatprep.subr.mxu0 0.0
    %346 = vmatpush1.msra.mxu0 0.0
    %347 = vmatprep.subr.mxu0 0.0
    %348 = vmatpush1.msra.mxu0 0.0
    %349 = vmatprep.subr.mxu0 0.0
    %350 = vmatpush1.msra.mxu0 0.0
    %351 = vmatprep.subr.mxu0 0.0
    %352 = vmatpush1.msra.mxu0 0.0
    %353 = vmatprep.subr.mxu0 0.0
    %354 = vmatpush1.msra.mxu0 0.0
    %355 = vmatprep.subr.mxu0 0.0
    %356 = vmatpush1.msra.mxu0 0.0
    %357 = vmatprep.subr.mxu0 0.0
    %358 = vmatpush1.msra.mxu0 0.0
    %359 = vmatprep.subr.mxu0 0.0
    %360 = vmatpush1.msra.mxu0 0.0
    %361 = vmatprep.subr.mxu0 0.0
    %362 = vmatpush1.msra.mxu0 0.0
    %363 = vmatprep.subr.mxu0 0.0
    %364 = vmatpush1.msra.mxu0 0.0
    %365 = vmatprep.subr.mxu0 0.0
    %366 = vmatpush1.msra.mxu0 0.0
    %367 = vmatprep.subr.mxu0 0.0
    %368 = vmatpush1.msra.mxu0 0.0
    %369 = vmatprep.subr.mxu0 0.0
    %370 = vmatpush1.msra.mxu0 0.0
    %371 = vmatprep.mubr.f32.mxu0 0.0
    %372 = vmatmul.mubr.f32.gmra.mrb[0].mxu0 %v296
    %v373 = vpop.f32.mrb[0].mxu0
    %v374 = vadd.f32 0.0, %v373
    %v375 = vpop.f32.mrb[0].mxu0
    %376 = vmatprep.mubr.f32.mxu0 0.0
    %377 = vmatmul.mubr.f32.gmra.mrb[0].mxu0 %v299
    %v378 = vpop.f32.mrb[0].mxu0
    %v379 = vadd.f32 0.0, %v378
    %v380 = vpop.f32.mrb[0].mxu0
    %381 = vmatprep.mubr.f32.mxu0 0.0
    %382 = vmatmul.mubr.f32.gmra.mrb[0].mxu0 %v302
    %v383 = vpop.f32.mrb[0].mxu0
    %v384 = vadd.f32 0.0, %v383
    %v385 = vpop.f32.mrb[0].mxu0
    %386 = vmatprep.mubr.f32.mxu0 0.0
    %387 = vmatmul.mubr.f32.gmra.mrb[0].mxu0 %v305
    %v388 = vpop.f32.mrb[0].mxu0
    %v389 = vadd.f32 0.0, %v388
    %v390 = vpop.f32.mrb[0].mxu0
    %391 = vdwg.mxu0
    %v392 = vadd.f32 %v264, %v374
    %v393 = vadd.f32 %v269, %v379
    %v394 = vadd.f32 %v274, %v384
    %v395 = vadd.f32 %v279, %v389
    %v396 = vld [vmem:[%s2] sm:$0x1]
    %v398 = vlaneseq
    %v399 = vshrl.u32 %v398, 7
    %v400 = vsub.s32 0, %v399
    %v401 = vrot.slane %v396, %v400
    %v403 = vadd.f32 %v392, %v401
    %v404 = vadd.f32 %v393, %v401
    %v405 = vadd.f32 %v394, %v401
    %v406 = vadd.f32 %v395, %v401
    %v407 = vmax.f32 %v403, 0.0
    %v408 = vmax.f32 %v404, 0.0
    %v409 = vmax.f32 %v405, 0.0
    %v410 = vmax.f32 %v406, 0.0
    %v411 = vld [vmem:[#allocation7] sm:$0xff]
    %v412 = vld [vmem:[#allocation7 + $0x8] sm:$0xff]
    %v413 = vld [vmem:[#allocation7 + $0x10] sm:$0xff]
    %v414 = vld [vmem:[#allocation7 + $0x18] sm:$0xff]
    %v415 = vld [vmem:[#allocation7 + $0x20] sm:$0xff]
    %v416 = vld [vmem:[#allocation7 + $0x28] sm:$0xff]
    %v417 = vld [vmem:[#allocation7 + $0x30] sm:$0xff]
    %v418 = vld [vmem:[#allocation7 + $0x38] sm:$0xff]
    %v419 = vld [vmem:[#allocation7 + $0x40] sm:$0xff]
    %v420 = vld [vmem:[#allocation7 + $0x48] sm:$0xff]
    %v421 = vld [vmem:[#allocation7 + $0x50] sm:$0xff]
    %v422 = vld [vmem:[#allocation7 + $0x58] sm:$0xff]
    %v423 = vld [vmem:[#allocation7 + $0x60] sm:$0xff]
    %v424 = vld [vmem:[#allocation7 + $0x68] sm:$0xff]
    %v425 = vld [vmem:[#allocation7 + $0x70] sm:$0xff]
    %v426 = vld [vmem:[#allocation7 + $0x78] sm:$0xff]
    %s427 = scalar_lea.vmem [#allocation7], 128
    %v428 = vld [vmem:[%s427] sm:$0xff]
    %v429 = vld [vmem:[%s427 + $0x8] sm:$0xff]
    %v430 = vld [vmem:[%s427 + $0x10] sm:$0xff]
    %v431 = vld [vmem:[%s427 + $0x18] sm:$0xff]
    %v432 = vld [vmem:[%s427 + $0x20] sm:$0xff]
    %v433 = vld [vmem:[%s427 + $0x28] sm:$0xff]
    %v434 = vld [vmem:[%s427 + $0x30] sm:$0xff]
    %v435 = vld [vmem:[%s427 + $0x38] sm:$0xff]
    %v436 = vld [vmem:[%s427 + $0x40] sm:$0xff]
    %v437 = vld [vmem:[%s427 + $0x48] sm:$0xff]
    %v438 = vld [vmem:[%s427 + $0x50] sm:$0xff]
    %v439 = vld [vmem:[%s427 + $0x58] sm:$0xff]
    %v440 = vld [vmem:[%s427 + $0x60] sm:$0xff]
    %v441 = vld [vmem:[%s427 + $0x68] sm:$0xff]
    %v442 = vld [vmem:[%s427 + $0x70] sm:$0xff]
    %v443 = vld [vmem:[%s427 + $0x78] sm:$0xff]
    %vm448 = vcmask 1046528
    %v449 = vrot.slane %v407, 1
    %v450 = vrot.slane %v408, 1
    %v451 = vsel %vm448, %v449, %v450
    %v452 = vrot.slane %v409, 1
    %v453 = vsel %vm448, %v450, %v452
    %v454 = vrot.slane %v410, 1
    %v455 = vsel %vm448, %v452, %v454
    %460 = vmatprep.subr.mxu0 0.0
    %461 = vmatpush1.msra.mxu0 %v428
    %462 = vmatprep.subr.mxu0 0.0
    %463 = vmatpush1.msra.mxu0 %v429
    %464 = vmatprep.subr.mxu0 0.0
    %465 = vmatpush1.msra.mxu0 %v430
    %466 = vmatprep.subr.mxu0 0.0
    %467 = vmatpush1.msra.mxu0 %v431
    %468 = vmatprep.subr.mxu0 0.0
    %469 = vmatpush1.msra.mxu0 %v432
    %470 = vmatprep.subr.mxu0 0.0
    %471 = vmatpush1.msra.mxu0 %v433
    %472 = vmatprep.subr.mxu0 0.0
    %473 = vmatpush1.msra.mxu0 %v434
    %474 = vmatprep.subr.mxu0 0.0
    %475 = vmatpush1.msra.mxu0 %v435
    %476 = vmatprep.subr.mxu0 0.0
    %477 = vmatpush1.msra.mxu0 %v436
    %478 = vmatprep.subr.mxu0 0.0
    %479 = vmatpush1.msra.mxu0 %v437
    %480 = vmatprep.subr.mxu0 0.0
    %481 = vmatpush1.msra.mxu0 %v438
    %482 = vmatprep.subr.mxu0 0.0
    %483 = vmatpush1.msra.mxu0 %v439
    %484 = vmatprep.subr.mxu0 0.0
    %485 = vmatpush1.msra.mxu0 %v440
    %486 = vmatprep.subr.mxu0 0.0
    %487 = vmatpush1.msra.mxu0 %v441
    %488 = vmatprep.subr.mxu0 0.0
    %489 = vmatpush1.msra.mxu0 %v442
    %490 = vmatprep.subr.mxu0 0.0
    %491 = vmatpush1.msra.mxu0 %v443
    %492 = vmatprep.subr.mxu0 0.0
    %493 = vmatpush1.msra.mxu0 0.0
    %494 = vmatprep.subr.mxu0 0.0
    %495 = vmatpush1.msra.mxu0 0.0
    %496 = vmatprep.subr.mxu0 0.0
    %497 = vmatpush1.msra.mxu0 0.0
    %498 = vmatprep.subr.mxu0 0.0
    %499 = vmatpush1.msra.mxu0 0.0
    %500 = vmatprep.subr.mxu0 0.0
    %501 = vmatpush1.msra.mxu0 0.0
    %502 = vmatprep.subr.mxu0 0.0
    %503 = vmatpush1.msra.mxu0 0.0
    %504 = vmatprep.subr.mxu0 0.0
    %505 = vmatpush1.msra.mxu0 0.0
    %506 = vmatprep.subr.mxu0 0.0
    %507 = vmatpush1.msra.mxu0 0.0
    %508 = vmatprep.subr.mxu0 0.0
    %509 = vmatpush1.msra.mxu0 0.0
    %510 = vmatprep.subr.mxu0 0.0
    %511 = vmatpush1.msra.mxu0 0.0
    %512 = vmatprep.subr.mxu0 0.0
    %513 = vmatpush1.msra.mxu0 0.0
    %514 = vmatprep.subr.mxu0 0.0
    %515 = vmatpush1.msra.mxu0 0.0
    %516 = vmatprep.subr.mxu0 0.0
    %517 = vmatpush1.msra.mxu0 0.0
    %518 = vmatprep.subr.mxu0 0.0
    %519 = vmatpush1.msra.mxu0 0.0
    %520 = vmatprep.subr.mxu0 0.0
    %521 = vmatpush1.msra.mxu0 0.0
    %522 = vmatprep.subr.mxu0 0.0
    %523 = vmatpush1.msra.mxu0 0.0
    %524 = vmatprep.mubr.f32.mxu0 0.0
    %525 = vmatmul.mubr.f32.gmra.mrb[0].mxu0 %v451
    %v526 = vpop.f32.mrb[0].mxu0
    %v527 = vadd.f32 0.0, %v526
    %v528 = vpop.f32.mrb[0].mxu0
    %529 = vmatprep.mubr.f32.mxu0 0.0
    %530 = vmatmul.mubr.f32.gmra.mrb[0].mxu0 %v453
    %v531 = vpop.f32.mrb[0].mxu0
    %v532 = vadd.f32 0.0, %v531
    %v533 = vpop.f32.mrb[0].mxu0
    %534 = vmatprep.mubr.f32.mxu0 0.0
    %535 = vmatmul.mubr.f32.gmra.mrb[0].mxu0 %v455
    %v536 = vpop.f32.mrb[0].mxu0
    %v537 = vadd.f32 0.0, %v536
    %v538 = vpop.f32.mrb[0].mxu0
    %539 = vmatprep.mubr.f32.mxu0 0.0
    %540 = vmatmul.mubr.f32.gmra.mrb[0].mxu0 %v454
    %v541 = vpop.f32.mrb[0].mxu0
    %v542 = vadd.f32 0.0, %v541
    %v543 = vpop.f32.mrb[0].mxu0
    %544 = vdwg.mxu0
    %545 = vmatprep.subr.mxu0 0.0
    %546 = vmatpush1.msra.mxu0 %v411
    %547 = vmatprep.subr.mxu0 0.0
    %548 = vmatpush1.msra.mxu0 %v412
    %549 = vmatprep.subr.mxu0 0.0
    %550 = vmatpush1.msra.mxu0 %v413
    %551 = vmatprep.subr.mxu0 0.0
    %552 = vmatpush1.msra.mxu0 %v414
    %553 = vmatprep.subr.mxu0 0.0
    %554 = vmatpush1.msra.mxu0 %v415
    %555 = vmatprep.subr.mxu0 0.0
    %556 = vmatpush1.msra.mxu0 %v416
    %557 = vmatprep.subr.mxu0 0.0
    %558 = vmatpush1.msra.mxu0 %v417
    %559 = vmatprep.subr.mxu0 0.0
    %560 = vmatpush1.msra.mxu0 %v418
    %561 = vmatprep.subr.mxu0 0.0
    %562 = vmatpush1.msra.mxu0 %v419
    %563 = vmatprep.subr.mxu0 0.0
    %564 = vmatpush1.msra.mxu0 %v420
    %565 = vmatprep.subr.mxu0 0.0
    %566 = vmatpush1.msra.mxu0 %v421
    %567 = vmatprep.subr.mxu0 0.0
    %568 = vmatpush1.msra.mxu0 %v422
    %569 = vmatprep.subr.mxu0 0.0
    %570 = vmatpush1.msra.mxu0 %v423
    %571 = vmatprep.subr.mxu0 0.0
    %572 = vmatpush1.msra.mxu0 %v424
    %573 = vmatprep.subr.mxu0 0.0
    %574 = vmatpush1.msra.mxu0 %v425
    %575 = vmatprep.subr.mxu0 0.0
    %576 = vmatpush1.msra.mxu0 %v426
    %577 = vmatprep.subr.mxu0 0.0
    %578 = vmatpush1.msra.mxu0 0.0
    %579 = vmatprep.subr.mxu0 0.0
    %580 = vmatpush1.msra.mxu0 0.0
    %581 = vmatprep.subr.mxu0 0.0
    %582 = vmatpush1.msra.mxu0 0.0
    %583 = vmatprep.subr.mxu0 0.0
    %584 = vmatpush1.msra.mxu0 0.0
    %585 = vmatprep.subr.mxu0 0.0
    %586 = vmatpush1.msra.mxu0 0.0
    %587 = vmatprep.subr.mxu0 0.0
    %588 = vmatpush1.msra.mxu0 0.0
    %589 = vmatprep.subr.mxu0 0.0
    %590 = vmatpush1.msra.mxu0 0.0
    %591 = vmatprep.subr.mxu0 0.0
    %592 = vmatpush1.msra.mxu0 0.0
    %593 = vmatprep.subr.mxu0 0.0
    %594 = vmatpush1.msra.mxu0 0.0
    %595 = vmatprep.subr.mxu0 0.0
    %596 = vmatpush1.msra.mxu0 0.0
    %597 = vmatprep.subr.mxu0 0.0
    %598 = vmatpush1.msra.mxu0 0.0
    %599 = vmatprep.subr.mxu0 0.0
    %600 = vmatpush1.msra.mxu0 0.0
    %601 = vmatprep.subr.mxu0 0.0
    %602 = vmatpush1.msra.mxu0 0.0
    %603 = vmatprep.subr.mxu0 0.0
    %604 = vmatpush1.msra.mxu0 0.0
    %605 = vmatprep.subr.mxu0 0.0
    %606 = vmatpush1.msra.mxu0 0.0
    %607 = vmatprep.subr.mxu0 0.0
    %608 = vmatpush1.msra.mxu0 0.0
    %609 = vmatprep.mubr.f32.mxu0 0.0
    %610 = vmatmul.mubr.f32.gmra.mrb[0].mxu0 %v407
    %v611 = vpop.f32.mrb[0].mxu0
    %v612 = vadd.f32 %v527, %v611
    %v613 = vpop.f32.mrb[0].mxu0
    %614 = vmatprep.mubr.f32.mxu0 0.0
    %615 = vmatmul.mubr.f32.gmra.mrb[0].mxu0 %v408
    %v616 = vpop.f32.mrb[0].mxu0
    %v617 = vadd.f32 %v532, %v616
    %v618 = vpop.f32.mrb[0].mxu0
    %619 = vmatprep.mubr.f32.mxu0 0.0
    %620 = vmatmul.mubr.f32.gmra.mrb[0].mxu0 %v409
    %v621 = vpop.f32.mrb[0].mxu0
    %v622 = vadd.f32 %v537, %v621
    %v623 = vpop.f32.mrb[0].mxu0
    %624 = vmatprep.mubr.f32.mxu0 0.0
    %625 = vmatmul.mubr.f32.gmra.mrb[0].mxu0 %v410
    %v626 = vpop.f32.mrb[0].mxu0
    %v627 = vadd.f32 %v542, %v626
    %v628 = vpop.f32.mrb[0].mxu0
    %629 = vdwg.mxu0
    %s630 = scalar_lea.vmem [#allocation7], 256
    %v631 = vld [vmem:[%s630] sm:$0xff]
    %v632 = vld [vmem:[%s630 + $0x8] sm:$0xff]
    %v633 = vld [vmem:[%s630 + $0x10] sm:$0xff]
    %v634 = vld [vmem:[%s630 + $0x18] sm:$0xff]
    %v635 = vld [vmem:[%s630 + $0x20] sm:$0xff]
    %v636 = vld [vmem:[%s630 + $0x28] sm:$0xff]
    %v637 = vld [vmem:[%s630 + $0x30] sm:$0xff]
    %v638 = vld [vmem:[%s630 + $0x38] sm:$0xff]
    %v639 = vld [vmem:[%s630 + $0x40] sm:$0xff]
    %v640 = vld [vmem:[%s630 + $0x48] sm:$0xff]
    %v641 = vld [vmem:[%s630 + $0x50] sm:$0xff]
    %v642 = vld [vmem:[%s630 + $0x58] sm:$0xff]
    %v643 = vld [vmem:[%s630 + $0x60] sm:$0xff]
    %v644 = vld [vmem:[%s630 + $0x68] sm:$0xff]
    %v645 = vld [vmem:[%s630 + $0x70] sm:$0xff]
    %v646 = vld [vmem:[%s630 + $0x78] sm:$0xff]
    %vm647 = vcmask 1045504
    %v648 = vrot.slane %v407, 2
    %v649 = vrot.slane %v408, 2
    %v650 = vsel %vm647, %v648, %v649
    %v651 = vrot.slane %v409, 2
    %v652 = vsel %vm647, %v649, %v651
    %v653 = vrot.slane %v410, 2
    %v654 = vsel %vm647, %v651, %v653
    %659 = vmatprep.subr.mxu0 0.0
    %660 = vmatpush1.msra.mxu0 %v631
    %661 = vmatprep.subr.mxu0 0.0
    %662 = vmatpush1.msra.mxu0 %v632
    %663 = vmatprep.subr.mxu0 0.0
    %664 = vmatpush1.msra.mxu0 %v633
    %665 = vmatprep.subr.mxu0 0.0
    %666 = vmatpush1.msra.mxu0 %v634
    %667 = vmatprep.subr.mxu0 0.0
    %668 = vmatpush1.msra.mxu0 %v635
    %669 = vmatprep.subr.mxu0 0.0
    %670 = vmatpush1.msra.mxu0 %v636
    %671 = vmatprep.subr.mxu0 0.0
    %672 = vmatpush1.msra.mxu0 %v637
    %673 = vmatprep.subr.mxu0 0.0
    %674 = vmatpush1.msra.mxu0 %v638
    %675 = vmatprep.subr.mxu0 0.0
    %676 = vmatpush1.msra.mxu0 %v639
    %677 = vmatprep.subr.mxu0 0.0
    %678 = vmatpush1.msra.mxu0 %v640
    %679 = vmatprep.subr.mxu0 0.0
    %680 = vmatpush1.msra.mxu0 %v641
    %681 = vmatprep.subr.mxu0 0.0
    %682 = vmatpush1.msra.mxu0 %v642
    %683 = vmatprep.subr.mxu0 0.0
    %684 = vmatpush1.msra.mxu0 %v643
    %685 = vmatprep.subr.mxu0 0.0
    %686 = vmatpush1.msra.mxu0 %v644
    %687 = vmatprep.subr.mxu0 0.0
    %688 = vmatpush1.msra.mxu0 %v645
    %689 = vmatprep.subr.mxu0 0.0
    %690 = vmatpush1.msra.mxu0 %v646
    %691 = vmatprep.subr.mxu0 0.0
    %692 = vmatpush1.msra.mxu0 0.0
    %693 = vmatprep.subr.mxu0 0.0
    %694 = vmatpush1.msra.mxu0 0.0
    %695 = vmatprep.subr.mxu0 0.0
    %696 = vmatpush1.msra.mxu0 0.0
    %697 = vmatprep.subr.mxu0 0.0
    %698 = vmatpush1.msra.mxu0 0.0
    %699 = vmatprep.subr.mxu0 0.0
    %700 = vmatpush1.msra.mxu0 0.0
    %701 = vmatprep.subr.mxu0 0.0
    %702 = vmatpush1.msra.mxu0 0.0
    %703 = vmatprep.subr.mxu0 0.0
    %704 = vmatpush1.msra.mxu0 0.0
    %705 = vmatprep.subr.mxu0 0.0
    %706 = vmatpush1.msra.mxu0 0.0
    %707 = vmatprep.subr.mxu0 0.0
    %708 = vmatpush1.msra.mxu0 0.0
    %709 = vmatprep.subr.mxu0 0.0
    %710 = vmatpush1.msra.mxu0 0.0
    %711 = vmatprep.subr.mxu0 0.0
    %712 = vmatpush1.msra.mxu0 0.0
    %713 = vmatprep.subr.mxu0 0.0
    %714 = vmatpush1.msra.mxu0 0.0
    %715 = vmatprep.subr.mxu0 0.0
    %716 = vmatpush1.msra.mxu0 0.0
    %717 = vmatprep.subr.mxu0 0.0
    %718 = vmatpush1.msra.mxu0 0.0
    %719 = vmatprep.subr.mxu0 0.0
    %720 = vmatpush1.msra.mxu0 0.0
    %721 = vmatprep.subr.mxu0 0.0
    %722 = vmatpush1.msra.mxu0 0.0
    %723 = vmatprep.mubr.f32.mxu0 0.0
    %724 = vmatmul.mubr.f32.gmra.mrb[0].mxu0 %v650
    %v725 = vpop.f32.mrb[0].mxu0
    %v726 = vadd.f32 0.0, %v725
    %v727 = vpop.f32.mrb[0].mxu0
    %728 = vmatprep.mubr.f32.mxu0 0.0
    %729 = vmatmul.mubr.f32.gmra.mrb[0].mxu0 %v652
    %v730 = vpop.f32.mrb[0].mxu0
    %v731 = vadd.f32 0.0, %v730
    %v732 = vpop.f32.mrb[0].mxu0
    %733 = vmatprep.mubr.f32.mxu0 0.0
    %734 = vmatmul.mubr.f32.gmra.mrb[0].mxu0 %v654
    %v735 = vpop.f32.mrb[0].mxu0
    %v736 = vadd.f32 0.0, %v735
    %v737 = vpop.f32.mrb[0].mxu0
    %738 = vmatprep.mubr.f32.mxu0 0.0
    %739 = vmatmul.mubr.f32.gmra.mrb[0].mxu0 %v653
    %v740 = vpop.f32.mrb[0].mxu0
    %v741 = vadd.f32 0.0, %v740
    %v742 = vpop.f32.mrb[0].mxu0
    %743 = vdwg.mxu0
    %v744 = vadd.f32 %v612, %v726
    %v745 = vadd.f32 %v617, %v731
    %v746 = vadd.f32 %v622, %v736
    %v747 = vadd.f32 %v627, %v741
    %v748 = vld [vmem:[%s4] sm:$0x1]
    %v750 = vlaneseq
    %v751 = vshrl.u32 %v750, 7
    %v752 = vsub.s32 0, %v751
    %v753 = vrot.slane %v748, %v752
    %v755 = vadd.f32 %v744, %v753
    %v756 = vadd.f32 %v745, %v753
    %v757 = vadd.f32 %v746, %v753
    %v758 = vadd.f32 %v747, %v753
    %v759 = vmax.f32 %v755, 0.0
    %v760 = vmax.f32 %v756, 0.0
    %v761 = vmax.f32 %v757, 0.0
    %v762 = vmax.f32 %v758, 0.0
    %763 = vst [vmem:[#allocation8] sm:$0xff] %v759
    %764 = vst [vmem:[#allocation8 + $0x8] sm:$0xff] %v760
    %765 = vst [vmem:[#allocation8 + $0x10] sm:$0xff] %v761
    %766 = vst [vmem:[#allocation8 + $0x18] sm:$0xf] %v762
    // Predicated region
    $region34: #{tpu_custom_call.1} parent=1 // pred_check
      _
    $region35: #{tpu_custom_call.1} parent=1 // pred_check_branch
      %768 = sbr.rel (0) target = $region37
    $region36: #{tpu_custom_call.1} parent=1 // pred_region
      %s770 = ssub.s32 512, 512
      %771 = vsyncadd [#allocation4], %s770
      %s772 = sshll.u32 [#allocation8], 4
      %s773 = int_to_ptr.vmem [resolvable:$true] %s772
      %778 = dma.vmem_to_hbm [thread:$0]  %s773, 512, %s5, [#allocation4], 128, 128, 8
    $region37: #{tpu_custom_call.1} parent=1 // pred_fallthru
      _
    // Predicated region
    $region38: #{tpu_custom_call.1} parent=1 // pred_check
      _
    $region39: #{tpu_custom_call.1} parent=1 // pred_check_branch
      %780 = sbr.rel (0) target = $region41
    $region40: #{tpu_custom_call.1} parent=1 // pred_region
      %781 = dma.done [#allocation4], 512
    $region41: #{tpu_custom_call.1} parent=1 // pred_fallthru
      _
    %782 = vsyncpa [#allocation3], 1
    %783 = vsyncpa [#allocation6], 1
    %784 = vsyncpa [#allocation4], 1

</llo_original>
